<compile_context>
chip_gen: v7x
topology: tpu7x:2x2x1
jax: 0.10.0
libtpu: 0.0.40
codegen_flags: <defaults>
</compile_context>

<pallas_src>
import math

import jax
import jax.numpy as jnp
from jax.experimental import pallas as pl
from jax.experimental.pallas import tpu as pltpu


def _round_up(x, m):
    return ((x + m - 1) // m) * m


def _discriminator_kernel(r_ref, a_ref, w_ref, b_ref, o_ref):
    # r_ref: (TN, D) readout tile (streamed)     a_ref: (TN, D) anchor tile (streamed)
    # w_ref: (D, D)  bilinear weight W (resident across grid steps)
    # b_ref: (1,)    bias scalar in SMEM
    # o_ref: (TN, 1) logits tile
    #
    # logits[n] = sum_j ( sum_i r[n,i] * W[i,j] ) * a[n,j] + b
    t = jnp.dot(r_ref[...], w_ref[...], preferred_element_type=jnp.float32)  # (TN, D) MXU
    prod = t * a_ref[...].astype(jnp.float32)                                # VPU
    # Lane-axis (D) reduction -> narrow (TN, 1) column (XLU). The masked store only
    # writes N*4 bytes in total.
    # NOTE (ragged last tile): padded *rows* of the final block hold uninitialized
    # VMEM; each row's result is independent (no cross-row mixing) and padded rows
    # are dropped by the output writeback mask, so this is safe.
    o_ref[...] = jnp.sum(prod, axis=1, keepdims=True) + b_ref[0]


def _choose_tile(N, block_n):
    """Pick the batch tile size TN.

    Rules:
      * TN == N (full-extent block) or TN a multiple of 8 (sublane constraint on the
        second-to-last block dim).
      * For small N a single block is used (per-step overhead dominates).
      * For larger N the grid gets >= 2 steps so the "parallel" batch axis can shard
        across both TensorCores on v7x, capped at block_n.
    """
    if N <= block_n and N <= 1024:
        return N
    tn = min(block_n, _round_up(pl.cdiv(N, 2), 128))
    tn = max(8, (tn // 8) * 8)
    return tn


def discriminator_forward(readout_emb, anchor_emb, weight, bias, *,
                          block_n=16384, input_dtype=None):
    """Bilinear discriminator forward (matches torch.nn.Bilinear(out_feats, out_feats, 1)).

    readout_emb: (N, D) float32
    anchor_emb:  (N, D) float32
    weight:      (1, D, D) float32   (PyTorch nn.Bilinear weight layout)
    bias:        (1,)     float32
    block_n:     max batch-tile size (rows per grid step), multiple of 8. Default 16384
                 (2 MiB f32 tile per input; triple-buffered total ~12 MiB, which fits the
                 default scoped-VMEM limit on v5e/v6e/v7x). Larger values may need
                 pltpu.CompilerParams(vmem_limit_bytes=...).
    input_dtype: None (exact f32 nn.Bilinear numerics) or jnp.bfloat16 to halve streamed
                 HBM traffic (~1.9x on a BW-bound kernel); accumulation stays f32.
    returns:     (N, 1)   float32

    Note: for a handful of rows, a fused XLA einsum upstream is cheaper than a
    pallas_call launch; this path targets large batches of subgraph samples.
    """
    N, D = readout_emb.shape
    if block_n % 8 != 0:
        raise ValueError("block_n must be a multiple of 8")

    w = weight.reshape(D, D)
    b1 = bias.reshape(1).astype(jnp.float32)

    if input_dtype is not None:
        readout_emb = readout_emb.astype(input_dtype)
        anchor_emb = anchor_emb.astype(input_dtype)
        w = w.astype(input_dtype)

    tn = _choose_tile(N, block_n)
    num_steps = pl.cdiv(N, tn)
    grid = (num_steps,)

    # Triple-buffer the two streamed inputs only when the grid is deep enough to
    # benefit; W / bias / output keep the default depth.
    stream_mode = pl.Buffered(3) if num_steps > 2 else None

    out = pl.pallas_call(
        _discriminator_kernel,
        out_shape=jax.ShapeDtypeStruct((N, 1), jnp.float32),
        grid_spec=pltpu.PrefetchScalarGridSpec(
            num_scalar_prefetch=0,
            grid=grid,
            in_specs=[
                pl.BlockSpec((tn, D), lambda i: (i, 0), pipeline_mode=stream_mode),  # readout
                pl.BlockSpec((tn, D), lambda i: (i, 0), pipeline_mode=stream_mode),  # anchor
                pl.BlockSpec((D, D), lambda i: (0, 0)),                              # W resident
                pl.BlockSpec(memory_space=pltpu.MemorySpace.SMEM),                   # bias
            ],
            out_specs=pl.BlockSpec((tn, 1), lambda i: (i, 0)),
        ),
        compiler_params=pltpu.CompilerParams(
            dimension_semantics=("parallel",),  # independent batch tiles -> megacore on v7x
        ),
    )(readout_emb, anchor_emb, w, b1)

    return out


def init_discriminator_params(key, out_feats):
    """Deterministic init matching the module's __init__:
    xavier_uniform_ on the bilinear weight (shape (1, D, D)), bias = 0."""
    D = out_feats
    # PyTorch xavier_uniform fan computation for a (1, D, D) tensor:
    # fan_in = D * D, fan_out = 1 * D
    fan_in = D * D
    fan_out = D
    bound = math.sqrt(6.0 / (fan_in + fan_out))
    weight = jax.random.uniform(
        key, (1, D, D), dtype=jnp.float32, minval=-bound, maxval=bound
    )
    bias = jnp.zeros((1,), dtype=jnp.float32)
    return weight, bias


def _reference(readout_emb, anchor_emb, weight, bias):
    return (
        jnp.einsum("ni,ij,nj->n", readout_emb, weight[0], anchor_emb)[:, None] + bias[0]
    )


if __name__ == "__main__":
    key = jax.random.PRNGKey(0)
    k_w, k_r, k_a = jax.random.split(key, 3)

    out_feats = 32  # embedding dim
    weight, bias = init_discriminator_params(k_w, out_feats)

    # Case 1: small batch, single full-extent block.
    N1 = 8
    r1 = jax.random.normal(k_r, (N1, out_feats), dtype=jnp.float32)
    a1 = jax.random.normal(k_a, (N1, out_feats), dtype=jnp.float32)
    out1 = jax.block_until_ready(discriminator_forward(r1, a1, weight, bias))
    assert out1.shape == (N1, 1)
    assert jnp.allclose(out1, _reference(r1, a1, weight, bias), atol=1e-4, rtol=1e-4)

    # Case 2: multi-block tiled batch with a ragged last tile (grid = 2).
    N2 = 200
    r2 = jax.random.normal(jax.random.fold_in(k_r, 1), (N2, out_feats), dtype=jnp.float32)
    a2 = jax.random.normal(jax.random.fold_in(k_a, 1), (N2, out_feats), dtype=jnp.float32)
    out2 = jax.block_until_ready(discriminator_forward(r2, a2, weight, bias, block_n=128))
    assert out2.shape == (N2, 1)
    assert jnp.allclose(out2, _reference(r2, a2, weight, bias), atol=1e-4, rtol=1e-4)

    # Case 3: deeper grid (>2 steps) exercising the triple-buffered streaming path.
    N3 = 400
    r3 = jax.random.normal(jax.random.fold_in(k_r, 2), (N3, out_feats), dtype=jnp.float32)
    a3 = jax.random.normal(jax.random.fold_in(k_a, 2), (N3, out_feats), dtype=jnp.float32)
    out3 = jax.block_until_ready(discriminator_forward(r3, a3, weight, bias, block_n=128))
    assert out3.shape == (N3, 1)
    assert jnp.allclose(out3, _reference(r3, a3, weight, bias), atol=1e-4, rtol=1e-4)

    # Case 4: opt-in bf16 streaming path (halves HBM traffic; looser tolerance).
    N4 = 256
    r4 = jax.random.normal(jax.random.fold_in(k_r, 3), (N4, out_feats), dtype=jnp.float32)
    a4 = jax.random.normal(jax.random.fold_in(k_a, 3), (N4, out_feats), dtype=jnp.float32)
    out4 = jax.block_until_ready(
        discriminator_forward(r4, a4, weight, bias, block_n=64, input_dtype=jnp.bfloat16)
    )
    assert out4.shape == (N4, 1)
    assert jnp.allclose(out4, _reference(r4, a4, weight, bias), atol=5e-2, rtol=5e-2)

    print("KERNEL_OK")
</pallas_src>

<mosaic_0001>
module attributes {stable_mosaic.version = 11 : i64} {
  func.func @_discriminator_kernel(%arg0: i32, %arg1: memref<8x32xf32, #tpu.memory_space<vmem>>, %arg2: memref<8x32xf32, #tpu.memory_space<vmem>>, %arg3: memref<32x32xf32, #tpu.memory_space<vmem>>, %arg4: memref<1xf32, #tpu.memory_space<smem>>, %arg5: memref<8x1xf32, #tpu.memory_space<vmem>>) attributes {dimension_semantics = [#tpu.dimension_semantics<parallel>], iteration_bounds = array<i64: 1>, scalar_prefetch = 0 : i64, scratch_operands = 0 : i64, tpu.core_type = #tpu.core_type<tc>, window_params = [{transform_indices = @transform_0, window_bounds = array<i64: 8, 32>}, {transform_indices = @transform_1, window_bounds = array<i64: 8, 32>}, {pipeline_mode = #tpu.pipeline_mode<synchronous>, transform_indices = @transform_2, window_bounds = array<i64: 32, 32>}, {transform_indices = @transform_3, window_bounds = array<i64: 1>}, {transform_indices = @transform_4, window_bounds = array<i64: 8, 1>}]} {
    %c0 = arith.constant 0 : index
    %c0_0 = arith.constant 0 : index
    %0 = vector.load %arg1[%c0, %c0_0] : memref<8x32xf32, #tpu.memory_space<vmem>>, vector<8x32xf32>
    %c0_1 = arith.constant 0 : index
    %c0_2 = arith.constant 0 : index
    %1 = vector.load %arg3[%c0_1, %c0_2] : memref<32x32xf32, #tpu.memory_space<vmem>>, vector<32x32xf32>
    %cst = arith.constant dense<0.000000e+00> : vector<8x32xf32>
    %2 = tpu.matmul %0, %1, %cst {dimension_numbers = #tpu.dot_dimension_numbers<[1], [0], [0], [1], [0, 0, 1, 1], [], []>} : vector<8x32xf32>, vector<32x32xf32>, vector<8x32xf32> -> vector<8x32xf32>
    %c0_3 = arith.constant 0 : index
    %c0_4 = arith.constant 0 : index
    %3 = vector.load %arg2[%c0_3, %c0_4] : memref<8x32xf32, #tpu.memory_space<vmem>>, vector<8x32xf32>
    %4 = arith.mulf %2, %3 : vector<8x32xf32>
    %cst_5 = arith.constant dense<0.000000e+00> : vector<8xf32>
    %5 = vector.multi_reduction <add>, %4, %cst_5 [1] : vector<8x32xf32> to vector<8xf32>
    %6 = vector.shape_cast %5 : vector<8xf32> to vector<8x1xf32>
    %c0_6 = arith.constant 0 : index
    %7 = memref.load %arg4[%c0_6] : memref<1xf32, #tpu.memory_space<smem>>
    %8 = vector.broadcast %7 : f32 to vector<8x1xf32>
    %9 = arith.addf %6, %8 : vector<8x1xf32>
    %c0_7 = arith.constant 0 : index
    %c0_8 = arith.constant 0 : index
    %10 = vector.load %arg5[%c0_7, %c0_8] : memref<8x1xf32, #tpu.memory_space<vmem>>, vector<8x1xf32>
    tpu.vector_store %arg5[%c0_7, %c0_8], %9 {strides = array<i32>} : memref<8x1xf32, #tpu.memory_space<vmem>>, vector<8x1xf32>,
    return
  }
  func.func @transform_0(%arg0: i32) -> (i32, i32) {
    %c0_i32 = arith.constant 0 : i32
    %c0_i32_0 = arith.constant 0 : i32
    return %arg0, %c0_i32 : i32, i32
  }
  func.func @transform_1(%arg0: i32) -> (i32, i32) {
    %c0_i32 = arith.constant 0 : i32
    %c0_i32_0 = arith.constant 0 : i32
    return %arg0, %c0_i32 : i32, i32
  }
  func.func @transform_2(%arg0: i32) -> (i32, i32) {
    %c0_i32 = arith.constant 0 : i32
    %c0_i32_0 = arith.constant 0 : i32
    %c0_i32_1 = arith.constant 0 : i32
    return %c0_i32, %c0_i32_0 : i32, i32
  }
  func.func @transform_3(%arg0: i32) -> i32 {
    %c0_i32 = arith.constant 0 : i32
    %c0_i32_0 = arith.constant 0 : i32
    return %c0_i32 : i32
  }
  func.func @transform_4(%arg0: i32) -> (i32, i32) {
    %c0_i32 = arith.constant 0 : i32
    %c0_i32_0 = arith.constant 0 : i32
    return %arg0, %c0_i32 : i32, i32
  }
}

</mosaic_0001>

<llo_original>
// kernel: tpu_custom_call.1
$region0: #{tpu_custom_call.1}
  #allocation0 [shape = 'u32[]', space=smem, size = 0x4, offset = 0x4, fixed_abs, tag = 'smem constant byte address 0x4 - core index']
  #allocation1 [shape = 'u32[144,128]{1,0:T(1,128)}', space=vmem, size = 0x12000, scoped, tag = 'internal scratch']
  #allocation2 [shape = 'f32[1]{0:T(128)S(6)}', space=smem, size = 0x200, scoped, tag = 'scoped memory for tpu_custom_call.1']
  %s0 = inlined_call_operand.hbm [shape: f32[8,32], index: 0, kind: input, shape index: {}]
  %s1 = inlined_call_operand.hbm [shape: f32[8,32], index: 1, kind: input, shape index: {}]
  %s2 = inlined_call_operand.hbm [shape: f32[32,32], index: 2, kind: input, shape index: {}]
  %s3 = inlined_call_operand.<no memory space> [shape: f32[1], index: 3, kind: input, shape index: {}]
  %s4 = inlined_call_operand.vmem [shape: f32[8,1], index: 4, kind: output, shape index: {}]
  %s5 = sld [smem:[#allocation0]]
  $region38: #{tpu_custom_call.1} parent=0
    _
  %s7 = ssub.s32 1, %s5
  %s8 = scalar_select 0, %s7, %s5
  %9 = sst [smem:[#allocation2]] %s3
  $region1: #{tpu_custom_call.1} parent=0
    #allocation3 [shape = 'u8[4096]{0}', space=vmem, size = 0x1000, scoped, tag = 'input window, operand 0, single buffered']
    #allocation4 [shape = 's32[1]{0}', space=sflag, size = 0x4, scoped, tag = 'scoped memory for tpu_custom_call.1']
    #allocation5 [shape = 'u8[4096]{0}', space=vmem, size = 0x1000, scoped, tag = 'input window, operand 1, single buffered']
    #allocation6 [shape = 's32[1]{0}', space=sflag, size = 0x4, scoped, tag = 'scoped memory for tpu_custom_call.1']
    #allocation7 [shape = 'u8[16384]{0}', space=vmem, size = 0x4000, scoped, tag = 'input window, operand 2, single buffered']
    %10 = vsyncpa [#allocation4], 0
    %11 = vsyncpa [#allocation6], 0
    // Predicated region
    $region2: #{tpu_custom_call.1} parent=1 // pred_check
      _
    $region3: #{tpu_custom_call.1} parent=1 // pred_check_branch
      %13 = sbr.rel (0) target = $region5
    $region4: #{tpu_custom_call.1} parent=1 // pred_region
      %s15 = ssub.s32 128, 128
      %16 = vsyncadd [#allocation4], %s15
      %s18 = sshll.u32 [#allocation3], 4
      %s19 = int_to_ptr.vmem [resolvable:$true] %s18
      %21 = dma.hbm_to_vmem [thread:$0]  %s0, 128, %s19, [#allocation4]
    $region5: #{tpu_custom_call.1} parent=1 // pred_fallthru
      _
    // Predicated region
    $region6: #{tpu_custom_call.1} parent=1 // pred_check
      _
    $region7: #{tpu_custom_call.1} parent=1 // pred_check_branch
      %23 = sbr.rel (0) target = $region9
    $region8: #{tpu_custom_call.1} parent=1 // pred_region
      %s25 = ssub.s32 128, 128
      %26 = vsyncadd [#allocation6], %s25
      %s28 = sshll.u32 [#allocation5], 4
      %s29 = int_to_ptr.vmem [resolvable:$true] %s28
      %31 = dma.hbm_to_vmem [thread:$0]  %s1, 128, %s29, [#allocation6]
    $region9: #{tpu_custom_call.1} parent=1 // pred_fallthru
      _
    // Predicated region
    $region10: #{tpu_custom_call.1} parent=1 // pred_check
      _
    $region11: #{tpu_custom_call.1} parent=1 // pred_check_branch
      %33 = sbr.rel (0) target = $region13
    $region12: #{tpu_custom_call.1} parent=1 // pred_region
      %s35 = ssub.s32 512, 512
      %36 = vsyncadd [#allocation6], %s35
      %s37 = sshll.u32 [#allocation7], 4
      %s38 = int_to_ptr.vmem [resolvable:$true] %s37
      %43 = dma.hbm_to_vmem [thread:$0]  %s2, 512, %s38, [#allocation6], 128, 128, 8
    $region13: #{tpu_custom_call.1} parent=1 // pred_fallthru
      _
    // Predicated region
    $region14: #{tpu_custom_call.1} parent=1 // pred_check
      _
    $region15: #{tpu_custom_call.1} parent=1 // pred_check_branch
      %45 = sbr.rel (0) target = $region17
    $region16: #{tpu_custom_call.1} parent=1 // pred_region
      _
    $region17: #{tpu_custom_call.1} parent=1 // pred_fallthru
      _
    // Predicated region
    $region18: #{tpu_custom_call.1} parent=1 // pred_check
      _
    $region19: #{tpu_custom_call.1} parent=1 // pred_check_branch
      %47 = sbr.rel (0) target = $region21
    $region20: #{tpu_custom_call.1} parent=1 // pred_region
      %48 = dma.done [#allocation4], 128
    $region21: #{tpu_custom_call.1} parent=1 // pred_fallthru
      _
    // Predicated region
    $region22: #{tpu_custom_call.1} parent=1 // pred_check
      _
    $region23: #{tpu_custom_call.1} parent=1 // pred_check_branch
      %50 = sbr.rel (0) target = $region25
    $region24: #{tpu_custom_call.1} parent=1 // pred_region
      %51 = dma.done [#allocation6], 128
    $region25: #{tpu_custom_call.1} parent=1 // pred_fallthru
      _
    // Predicated region
    $region26: #{tpu_custom_call.1} parent=1 // pred_check
      _
    $region27: #{tpu_custom_call.1} parent=1 // pred_check_branch
      %53 = sbr.rel (0) target = $region29
    $region28: #{tpu_custom_call.1} parent=1 // pred_region
      %54 = dma.done [#allocation6], 512
    $region29: #{tpu_custom_call.1} parent=1 // pred_fallthru
      _
    %v55 = vld [vmem:[#allocation3] sm:$0xff]
    %v56 = vld [vmem:[#allocation7] sm:$0xff]
    %v57 = vld [vmem:[#allocation7 + $0x8] sm:$0xff]
    %v58 = vld [vmem:[#allocation7 + $0x10] sm:$0xff]
    %v59 = vld [vmem:[#allocation7 + $0x18] sm:$0xff]
    %vm60 = vcmask 261120
    %v62 = vsel %vm60, %v55, 0
    %64 = vmatprep.subr.mxu0 0.0
    %65 = vmatpush1.msra.mxu0 %v56
    %66 = vmatprep.subr.mxu0 0.0
    %67 = vmatpush1.msra.mxu0 %v57
    %68 = vmatprep.subr.mxu0 0.0
    %69 = vmatpush1.msra.mxu0 %v58
    %70 = vmatprep.subr.mxu0 0.0
    %71 = vmatpush1.msra.mxu0 %v59
    %72 = vmatprep.subr.mxu0 0.0
    %73 = vmatpush1.msra.mxu0 0.0
    %74 = vmatprep.subr.mxu0 0.0
    %75 = vmatpush1.msra.mxu0 0.0
    %76 = vmatprep.subr.mxu0 0.0
    %77 = vmatpush1.msra.mxu0 0.0
    %78 = vmatprep.subr.mxu0 0.0
    %79 = vmatpush1.msra.mxu0 0.0
    %80 = vmatprep.subr.mxu0 0.0
    %81 = vmatpush1.msra.mxu0 0.0
    %82 = vmatprep.subr.mxu0 0.0
    %83 = vmatpush1.msra.mxu0 0.0
    %84 = vmatprep.subr.mxu0 0.0
    %85 = vmatpush1.msra.mxu0 0.0
    %86 = vmatprep.subr.mxu0 0.0
    %87 = vmatpush1.msra.mxu0 0.0
    %88 = vmatprep.subr.mxu0 0.0
    %89 = vmatpush1.msra.mxu0 0.0
    %90 = vmatprep.subr.mxu0 0.0
    %91 = vmatpush1.msra.mxu0 0.0
    %92 = vmatprep.subr.mxu0 0.0
    %93 = vmatpush1.msra.mxu0 0.0
    %94 = vmatprep.subr.mxu0 0.0
    %95 = vmatpush1.msra.mxu0 0.0
    %96 = vmatprep.subr.mxu0 0.0
    %97 = vmatpush1.msra.mxu0 0.0
    %98 = vmatprep.subr.mxu0 0.0
    %99 = vmatpush1.msra.mxu0 0.0
    %100 = vmatprep.subr.mxu0 0.0
    %101 = vmatpush1.msra.mxu0 0.0
    %102 = vmatprep.subr.mxu0 0.0
    %103 = vmatpush1.msra.mxu0 0.0
    %104 = vmatprep.subr.mxu0 0.0
    %105 = vmatpush1.msra.mxu0 0.0
    %106 = vmatprep.subr.mxu0 0.0
    %107 = vmatpush1.msra.mxu0 0.0
    %108 = vmatprep.subr.mxu0 0.0
    %109 = vmatpush1.msra.mxu0 0.0
    %110 = vmatprep.subr.mxu0 0.0
    %111 = vmatpush1.msra.mxu0 0.0
    %112 = vmatprep.subr.mxu0 0.0
    %113 = vmatpush1.msra.mxu0 0.0
    %114 = vmatprep.subr.mxu0 0.0
    %115 = vmatpush1.msra.mxu0 0.0
    %116 = vmatprep.subr.mxu0 0.0
    %117 = vmatpush1.msra.mxu0 0.0
    %118 = vmatprep.subr.mxu0 0.0
    %119 = vmatpush1.msra.mxu0 0.0
    %120 = vmatprep.subr.mxu0 0.0
    %121 = vmatpush1.msra.mxu0 0.0
    %122 = vmatprep.subr.mxu0 0.0
    %123 = vmatpush1.msra.mxu0 0.0
    %124 = vmatprep.subr.mxu0 0.0
    %125 = vmatpush1.msra.mxu0 0.0
    %126 = vmatprep.subr.mxu0 0.0
    %127 = vmatpush1.msra.mxu0 0.0
    %128 = vmatprep.mubr.f32.mxu0 0.0
    %129 = vmatmul.mubr.f32.gmra.mrb[0].mxu0 %v62
    %v130 = vpop.f32.mrb[0].mxu0
    %v131 = vadd.f32 0.0, %v130
    %v132 = vpop.f32.mrb[0].mxu0
    %133 = vdwg.mxu0
    %v134 = vld [vmem:[#allocation5] sm:$0xff]
    %v135 = vmul.f32 %v131, %v134
    %v136 = vsel %vm60, %v135, 0.0
    %137 = vadd.xlane.f32.xlu0 %v136
    %v138 = vpop.xlane.xlu0 %137
    %s139 = sld [smem:[#allocation2]]
    %v140 = vstv %s139
    %v141 = vadd.f32 %v138, %v140
    %vm142 = vcmask 7168
    %143 = vst.msk [vmem:[%s4] sm:$0xff] %vm142, %v141
    // Predicated region
    $region30: #{tpu_custom_call.1} parent=1 // pred_check
      _
    $region31: #{tpu_custom_call.1} parent=1 // pred_check_branch
      %145 = sbr.rel (0) target = $region33
    $region32: #{tpu_custom_call.1} parent=1 // pred_region
      _
    $region33: #{tpu_custom_call.1} parent=1 // pred_fallthru
      _
    // Predicated region
    $region34: #{tpu_custom_call.1} parent=1 // pred_check
      _
    $region35: #{tpu_custom_call.1} parent=1 // pred_check_branch
      %147 = sbr.rel (0) target = $region37
    $region36: #{tpu_custom_call.1} parent=1 // pred_region
      _
    $region37: #{tpu_custom_call.1} parent=1 // pred_fallthru
      _
    %148 = vsyncpa [#allocation4], 1
    %149 = vsyncpa [#allocation6], 1

</llo_original>
